<compile_context>
chip_gen: v5e
topology: v5e:2x2
jax: 0.10.0
libtpu: 0.0.40
codegen_flags: <defaults>
</compile_context>

<pallas_src>
import functools

import jax
import jax.numpy as jnp
from jax.experimental import pallas as pl
from jax.experimental.pallas import tpu as pltpu


def _saaa_kernel(desc_ref, x_ref, o_ref, *, topk):
    """One (batch, spatial-tile) grid step.

    desc_ref: (1, c_de, topk)   conv+bias-folded descriptors for this batch
    x_ref   : (1, C, T_HW)      channels x flattened-spatial tile
    o_ref   : (1, c_de, T_HW)
    """
    x = x_ref[0]                                     # (C, T_HW), native dtype
    C, HW = x.shape
    ch_iota = jax.lax.broadcasted_iota(jnp.int32, (C, HW), 0)
    neg = jnp.asarray(-jnp.inf, dtype=x.dtype)

    # Iterative top-k extraction along channels (values sorted descending).
    # Exactly one occurrence of the running max is removed per step (matches
    # torch.topk value semantics under duplicates).  Fine for small/moderate
    # C; a streaming insertion top-k would be preferable for very large C.
    cur = x
    vals = []
    for k in range(topk):
        m = jnp.max(cur, axis=0, keepdims=True)      # (1, T_HW)
        vals.append(m.astype(jnp.float32))
        if k + 1 < topk:                             # no removal on last step
            idx = jnp.min(jnp.where(cur == m, ch_iota, C),
                          axis=0, keepdims=True)
            cur = jnp.where(ch_iota == idx, neg, cur)

    # Softmax over the top-k axis; rows are sorted so vals[0] is the max
    # (exp(0) == 1 exactly -> one EUP exp saved).
    mx = vals[0]
    e = [jnp.ones_like(mx)] + [jnp.exp(vals[k] - mx) for k in range(1, topk)]
    denom = e[0]
    for k in range(1, topk):
        denom = denom + e[k]
    r = pl.reciprocal(denom, approx=True)            # EUP slot
    r = r * (2.0 - denom * r)                        # one Newton step

    # (c_de, topk) x (topk, T_HW) unrolled as `topk` broadcast-FMAs on the
    # VPU (K=topk, M=c_de would be <1% MXU utilization).
    desc = desc_ref[0].astype(jnp.float32)           # (c_de, topk)
    out = desc[:, 0:1] * (e[0] * r)
    for k in range(1, topk):
        out = out + desc[:, k:k + 1] * (e[k] * r)

    o_ref[0] = out.astype(o_ref.dtype)


def saaa_forward(descriptors, input_de, conv_w, conv_b, topk, *, tile_hw=512):
    """descriptors: (B, c_de, topk); input_de: (B, C, H, W) NCHW."""
    b, c, h, w = input_de.shape
    c_de = descriptors.shape[1]
    hw = h * w

    # Fold the 1x1 conv weight AND bias into the descriptors (tiny einsum,
    # done once by XLA).  Bias folding is exact because softmax rows sum to 1:
    #   W @ (desc @ att) + b == (W @ desc + b) @ att.
    w2 = conv_w.reshape(c_de, c_de).astype(jnp.float32)
    fused_desc = jnp.einsum("oc,bck->bok", w2, descriptors.astype(jnp.float32))
    fused_desc = fused_desc + conv_b.astype(jnp.float32)[None, :, None]

    # Flatten spatial; pick a lane-aligned (multiple of 128) tile and pad HW
    # so every tile is full -> unmasked, lane-dense loads/stores and a
    # bounded VMEM footprint regardless of H*W or C.
    lane = 128
    t_hw = max(lane, min(tile_hw, pl.cdiv(hw, lane) * lane))
    t_hw = pl.cdiv(t_hw, lane) * lane
    hw_pad = pl.cdiv(hw, t_hw) * t_hw
    n_hw = hw_pad // t_hw

    x = input_de.reshape(b, c, hw)
    if hw_pad != hw:
        x = jnp.pad(x, ((0, 0), (0, 0), (0, hw_pad - hw)))

    kernel = functools.partial(_saaa_kernel, topk=topk)
    cost = pl.CostEstimate(
        flops=int(b * hw_pad * (4 * c * topk + 3 * c_de * topk)),
        transcendentals=int(b * hw_pad * topk),
        bytes_accessed=int(b * c * hw_pad * input_de.dtype.itemsize
                           + b * c_de * hw_pad * input_de.dtype.itemsize
                           + b * c_de * topk * 4),
    )
    out = pl.pallas_call(
        kernel,
        out_shape=jax.ShapeDtypeStruct((b, c_de, hw_pad), input_de.dtype),
        grid=(b, n_hw),
        in_specs=[
            pl.BlockSpec((1, c_de, topk), lambda i, j: (i, 0, 0)),  # per-batch
            pl.BlockSpec((1, c, t_hw), lambda i, j: (i, 0, j)),
        ],
        out_specs=pl.BlockSpec((1, c_de, t_hw), lambda i, j: (i, 0, j)),
        compiler_params=pltpu.CompilerParams(
            dimension_semantics=("parallel", "parallel")),
        cost_estimate=cost,
    )(fused_desc, x)
    return out[:, :, :hw].reshape(b, c_de, h, w)


def saaa_reference(descriptors, input_de, conv_w, conv_b, topk):
    """Pure-JAX reference mirroring the PyTorch forward (softmax dim=1 of
    the (b, topk, h, w) top-k output, i.e. over the top-k axis)."""
    b, c, h, w = input_de.shape
    c_de = descriptors.shape[1]
    vals = jax.lax.top_k(jnp.moveaxis(input_de, 1, -1), topk)[0]   # (b,h,w,topk)
    att = jax.nn.softmax(vals, axis=-1)
    att = jnp.moveaxis(att, -1, 1).reshape(b, topk, h * w)
    out = jnp.einsum("bdk,bkn->bdn", descriptors, att)             # (b, c_de, hw)
    w2 = conv_w.reshape(c_de, c_de)
    out = jnp.einsum("oc,bcn->bon", w2, out) + conv_b[None, :, None]
    return out.reshape(b, c_de, h, w)


if __name__ == "__main__":
    B, C, H, W = 2, 8, 16, 16      # input_de: NCHW
    TOPK, C_DE = 3, 4              # SAAA(top_k=3, c_de=4)

    key = jax.random.PRNGKey(0)
    k1, k2, k3, k4 = jax.random.split(key, 4)
    input_de = jax.random.normal(k1, (B, C, H, W), jnp.float32)
    descriptors = jax.random.normal(k2, (B, C_DE, TOPK), jnp.float32)
    # deterministic "out_conv" parameters (Conv2d(c_de, c_de, 1))
    conv_w = jax.random.normal(k3, (C_DE, C_DE, 1, 1), jnp.float32) * 0.1
    conv_b = jax.random.normal(k4, (C_DE,), jnp.float32) * 0.1

    out = saaa_forward(descriptors, input_de, conv_w, conv_b, TOPK)
    jax.block_until_ready(out)

    ref = saaa_reference(descriptors, input_de, conv_w, conv_b, TOPK)
    assert out.shape == (B, C_DE, H, W), out.shape
    assert jnp.allclose(out, ref, atol=1e-4, rtol=1e-4), "mismatch vs reference"

    print("KERNEL_OK")
</pallas_src>

<mosaic_0001>
module attributes {stable_mosaic.version = 11 : i64} {
  func.func @_saaa_kernel(%arg0: i32, %arg1: i32, %arg2: memref<1x4x3xf32, #tpu.memory_space<vmem>>, %arg3: memref<1x8x256xf32, #tpu.memory_space<vmem>>, %arg4: memref<1x4x256xf32, #tpu.memory_space<vmem>>) attributes {dimension_semantics = [#tpu.dimension_semantics<parallel>, #tpu.dimension_semantics<parallel>], iteration_bounds = array<i64: 2, 1>, scalar_prefetch = 0 : i64, scratch_operands = 0 : i64, tpu.core_type = #tpu.core_type<tc>, window_params = [{transform_indices = @transform_0, window_bounds = array<i64: 1, 4, 3>}, {transform_indices = @transform_1, window_bounds = array<i64: 1, 8, 256>}, {transform_indices = @transform_2, window_bounds = array<i64: 1, 4, 256>}]} {
    %c0 = arith.constant 0 : index
    %c0_0 = arith.constant 0 : index
    %c0_1 = arith.constant 0 : index
    %0 = vector.load %arg3[%c0, %c0_0, %c0_1] : memref<1x8x256xf32, #tpu.memory_space<vmem>>, vector<1x8x256xf32>
    %1 = vector.shape_cast %0 : vector<1x8x256xf32> to vector<8x256xf32>
    %2 = tpu.iota {dimensions = array<i32: 0>} : vector<8x256xi32>
    %cst = arith.constant dense<0xFF800000> : vector<256xf32>
    %3 = vector.multi_reduction <maximumf>, %1, %cst [0] : vector<8x256xf32> to vector<256xf32>
    %4 = vector.shape_cast %3 : vector<256xf32> to vector<1x256xf32>
    %5 = vector.broadcast %4 : vector<1x256xf32> to vector<8x256xf32>
    %6 = arith.cmpf oeq, %1, %5 : vector<8x256xf32>
    %c8_i32 = arith.constant 8 : i32
    %7 = vector.broadcast %c8_i32 : i32 to vector<8x256xi32>
    %8 = arith.select %6, %2, %7 : vector<8x256xi1>, vector<8x256xi32>
    %cst_2 = arith.constant dense<2147483647> : vector<256xi32>
    %9 = vector.multi_reduction <minsi>, %8, %cst_2 [0] : vector<8x256xi32> to vector<256xi32>
    %10 = vector.shape_cast %9 : vector<256xi32> to vector<1x256xi32>
    %11 = vector.broadcast %10 : vector<1x256xi32> to vector<8x256xi32>
    %12 = arith.cmpi eq, %2, %11 : vector<8x256xi32>
    %cst_3 = arith.constant 0xFF800000 : f32
    %13 = vector.broadcast %cst_3 : f32 to vector<8x256xf32>
    %14 = arith.select %12, %13, %1 : vector<8x256xi1>, vector<8x256xf32>
    %cst_4 = arith.constant dense<0xFF800000> : vector<256xf32>
    %15 = vector.multi_reduction <maximumf>, %14, %cst_4 [0] : vector<8x256xf32> to vector<256xf32>
    %16 = vector.shape_cast %15 : vector<256xf32> to vector<1x256xf32>
    %17 = vector.broadcast %16 : vector<1x256xf32> to vector<8x256xf32>
    %18 = arith.cmpf oeq, %14, %17 : vector<8x256xf32>
    %c8_i32_5 = arith.constant 8 : i32
    %19 = vector.broadcast %c8_i32_5 : i32 to vector<8x256xi32>
    %20 = arith.select %18, %2, %19 : vector<8x256xi1>, vector<8x256xi32>
    %cst_6 = arith.constant dense<2147483647> : vector<256xi32>
    %21 = vector.multi_reduction <minsi>, %20, %cst_6 [0] : vector<8x256xi32> to vector<256xi32>
    %22 = vector.shape_cast %21 : vector<256xi32> to vector<1x256xi32>
    %23 = vector.broadcast %22 : vector<1x256xi32> to vector<8x256xi32>
    %24 = arith.cmpi eq, %2, %23 : vector<8x256xi32>
    %cst_7 = arith.constant 0xFF800000 : f32
    %25 = vector.broadcast %cst_7 : f32 to vector<8x256xf32>
    %26 = arith.select %24, %25, %14 : vector<8x256xi1>, vector<8x256xf32>
    %cst_8 = arith.constant dense<0xFF800000> : vector<256xf32>
    %27 = vector.multi_reduction <maximumf>, %26, %cst_8 [0] : vector<8x256xf32> to vector<256xf32>
    %28 = vector.shape_cast %27 : vector<256xf32> to vector<1x256xf32>
    %cst_9 = arith.constant 1.000000e+00 : f32
    %29 = vector.broadcast %cst_9 : f32 to vector<1x256xf32>
    %30 = arith.subf %16, %4 : vector<1x256xf32>
    %31 = math.exp %30 : vector<1x256xf32>
    %32 = arith.subf %28, %4 : vector<1x256xf32>
    %33 = math.exp %32 : vector<1x256xf32>
    %34 = arith.addf %29, %31 : vector<1x256xf32>
    %35 = arith.addf %34, %33 : vector<1x256xf32>
    %36 = tpu.reciprocal %35 {approx = true} : vector<1x256xf32> -> vector<1x256xf32>
    %37 = arith.mulf %35, %36 : vector<1x256xf32>
    %cst_10 = arith.constant 2.000000e+00 : f32
    %38 = vector.broadcast %cst_10 : f32 to vector<1x256xf32>
    %39 = arith.subf %38, %37 : vector<1x256xf32>
    %40 = arith.mulf %36, %39 : vector<1x256xf32>
    %c0_11 = arith.constant 0 : index
    %c0_12 = arith.constant 0 : index
    %c0_13 = arith.constant 0 : index
    %41 = vector.load %arg2[%c0_11, %c0_12, %c0_13] : memref<1x4x3xf32, #tpu.memory_space<vmem>>, vector<1x4x3xf32>
    %42 = vector.shape_cast %41 : vector<1x4x3xf32> to vector<4x3xf32>
    %43 = vector.extract_strided_slice %42 {offsets = [0, 0], sizes = [4, 1], strides = [1, 1]} : vector<4x3xf32> to vector<4x1xf32>
    %44 = arith.mulf %29, %40 : vector<1x256xf32>
    %45 = vector.broadcast %43 : vector<4x1xf32> to vector<4x256xf32>
    %46 = vector.broadcast %44 : vector<1x256xf32> to vector<4x256xf32>
    %47 = arith.mulf %45, %46 : vector<4x256xf32>
    %48 = vector.extract_strided_slice %42 {offsets = [0, 1], sizes = [4, 1], strides = [1, 1]} : vector<4x3xf32> to vector<4x1xf32>
    %49 = arith.mulf %31, %40 : vector<1x256xf32>
    %50 = vector.broadcast %48 : vector<4x1xf32> to vector<4x256xf32>
    %51 = vector.broadcast %49 : vector<1x256xf32> to vector<4x256xf32>
    %52 = arith.mulf %50, %51 : vector<4x256xf32>
    %53 = arith.addf %47, %52 : vector<4x256xf32>
    %54 = vector.extract_strided_slice %42 {offsets = [0, 2], sizes = [4, 1], strides = [1, 1]} : vector<4x3xf32> to vector<4x1xf32>
    %55 = arith.mulf %33, %40 : vector<1x256xf32>
    %56 = vector.broadcast %54 : vector<4x1xf32> to vector<4x256xf32>
    %57 = vector.broadcast %55 : vector<1x256xf32> to vector<4x256xf32>
    %58 = arith.mulf %56, %57 : vector<4x256xf32>
    %59 = arith.addf %53, %58 : vector<4x256xf32>
    %c0_14 = arith.constant 0 : index
    %c0_15 = arith.constant 0 : index
    %c0_16 = arith.constant 0 : index
    %60 = vector.load %arg4[%c0_14, %c0_15, %c0_16] : memref<1x4x256xf32, #tpu.memory_space<vmem>>, vector<1x4x256xf32>
    %61 = vector.shape_cast %60 : vector<1x4x256xf32> to vector<4x256xf32>
    %62 = vector.shape_cast %59 : vector<4x256xf32> to vector<1x4x256xf32>
    tpu.vector_store %arg4[%c0_14, %c0_15, %c0_16], %62 {strides = array<i32>} : memref<1x4x256xf32, #tpu.memory_space<vmem>>, vector<1x4x256xf32>,
    return
  }
  func.func @transform_0(%arg0: i32, %arg1: i32) -> (i32, i32, i32) {
    %c0_i32 = arith.constant 0 : i32
    %c0_i32_0 = arith.constant 0 : i32
    %c0_i32_1 = arith.constant 0 : i32
    return %arg0, %c0_i32, %c0_i32_0 : i32, i32, i32
  }
  func.func @transform_1(%arg0: i32, %arg1: i32) -> (i32, i32, i32) {
    %c0_i32 = arith.constant 0 : i32
    %c0_i32_0 = arith.constant 0 : i32
    return %arg0, %c0_i32, %arg1 : i32, i32, i32
  }
  func.func @transform_2(%arg0: i32, %arg1: i32) -> (i32, i32, i32) {
    %c0_i32 = arith.constant 0 : i32
    %c0_i32_0 = arith.constant 0 : i32
    return %arg0, %c0_i32, %arg1 : i32, i32, i32
  }
}

</mosaic_0001>

<llo_original>
// kernel: tpu_custom_call.1
$region0: #{tpu_custom_call.1}
  #allocation0 [shape = 'u32[]', space=smem, size = 0x4, offset = 0x4, fixed_abs, tag = 'smem constant byte address 0x4 - core index']
  #allocation1 [shape = 'u32[72,128]{1,0:T(1,128)}', space=vmem, size = 0x9000, scoped, tag = 'internal scratch']
  %s0 = inlined_call_operand.vmem [shape: f32[2,4,3], index: 0, kind: input, shape index: {}]
  %s1 = inlined_call_operand.hbm [shape: f32[2,8,256], index: 1, kind: input, shape index: {}]
  %s2 = inlined_call_operand.hbm [shape: f32[2,4,256], index: 2, kind: output, shape index: {}]
  %s3 = sld [smem:[#allocation0]]
  $region45: #{tpu_custom_call.1} parent=0
    _
  %s5 = ssub.s32 1, %s3
  %s6 = scalar_select 0, %s5, %s3
  $region1: #{tpu_custom_call.1} parent=0
    #allocation2 [shape = 'u8[16384]{0}', space=vmem, size = 0x4000, scoped, tag = 'input window, operand 1']
    #allocation3 [shape = 's32[2]{0}', space=sflag, size = 0x8, scoped, tag = 'scoped memory for tpu_custom_call.1']
    #allocation4 [shape = 's32[2]{0}', space=sflag, size = 0x8, scoped, tag = 'scoped memory for tpu_custom_call.1']
    #allocation5 [shape = 'u8[8192]{0}', space=vmem, size = 0x2000, scoped, tag = 'output window, operand 0']
    %7 = vsyncpa [#allocation3], 0
    %s8 = scalar_lea.sflag [#allocation3], 1
    %9 = vsyncpa %s8, 0
    %10 = vsyncpa [#allocation4], 0
    %s11 = scalar_lea.sflag [#allocation4], 1
    %12 = vsyncpa %s11, 0
    loop: start=0, step=1, limit=4
    $region2: #{tpu_custom_call.1} parent=1 // loop_pre_header
      _
    $region3: #{tpu_custom_call.1} parent=1 // loop_header
      %s14 = sphi 0, %s18
      %p15 = scmp.ge.s32.totalorder %s14, 4
      %s21 = sphi 0, %s33
      %s22 = sphi 0, %s29
      %s23 = sphi 0, %s21
      %s24 = sphi 0, %s22
      %s25 = sphi 0, %s23
      %s26 = sphi 0, %s24
      %s36 = sphi 0, %s38
      %s39 = sphi 0, %s36
      %s40 = sphi 0, %s39
      %s56 = sphi 0, %s40
      %s64 = sphi 0, %s66
      %s67 = sphi 0, %s64
      %s68 = sphi 0, %s67
      %s84 = sphi 0, %s68
      %s92 = sphi 0, %s94
      %s95 = sphi 0, %s92
      %s96 = sphi 0, %s95
      %s112 = sphi 0, %s96
    $region4: #{tpu_custom_call.1} parent=1 // loop_header_branch
      %17 = sbr.rel (%p15) target = $region8
    $region5: #{tpu_custom_call.1} parent=1 // loop_body
      %s19 = ssub.s32 %s14, 1
      %s20 = ssub.s32 %s14, 2
      %s27 = sadd.s32 1, %s22
      %p28 = scmp.ge.s32.totalorder %s27, 1
      %s29 = scalar_select %p28, 0, %s27
      %s30 = sadd.s32 1, %s21
      %s31 = scalar_select %p28, %s30, %s21
      %p32 = scmp.ge.s32.totalorder %s31, 2
      %s33 = scalar_select %p32, 0, %s31
      %s34 = ssub.s32 %s21, %s33
      %p35 = scmp.eq.s32.totalorder %s34, 0
      %s37 = sadd.s32 %s36, 1
      %s38 = scalar_select %p35, %s36, %s37
      %p41 = pneg %p35
      %p42 = scmp.eq.s32.totalorder %s14, 1
      %p43 = por %p41, %p42
      %p44 = scmp.ne.s32.totalorder %s36, %s39
      %p45 = scmp.eq.s32.totalorder %s14, 0
      %p46 = por %p44, %p45
      %p47 = scmp.ne.s32.totalorder %s36, %s39
      %p48 = scmp.eq.s32.totalorder %s19, 1
      %p49 = por %p47, %p48
      %p50 = scmp.ne.s32.totalorder %s39, %s40
      %p51 = scmp.eq.s32.totalorder %s19, 0
      %p52 = por %p50, %p51
      %p53 = scmp.ne.s32.totalorder %s39, %s40
      %p54 = scmp.eq.s32.totalorder %s20, 1
      %p55 = por %p53, %p54
      %p57 = scmp.ne.s32.totalorder %s40, %s56
      %p58 = scmp.eq.s32.totalorder %s20, 0
      %p59 = por %p57, %p58
      %s60 = ssub.s32 %s21, %s33
      %s61 = ssub.s32 %s22, %s29
      %s62 = sor.u32 %s60, %s61
      %p63 = scmp.eq.s32.totalorder %s62, 0
      %s65 = sadd.s32 %s64, 1
      %s66 = scalar_select %p63, %s64, %s65
      %p69 = pneg %p63
      %p70 = scmp.eq.s32.totalorder %s14, 1
      %p71 = por %p69, %p70
      %p72 = scmp.ne.s32.totalorder %s64, %s67
      %p73 = scmp.eq.s32.totalorder %s14, 0
      %p74 = por %p72, %p73
      %p75 = scmp.ne.s32.totalorder %s64, %s67
      %p76 = scmp.eq.s32.totalorder %s19, 1
      %p77 = por %p75, %p76
      %p78 = scmp.ne.s32.totalorder %s67, %s68
      %p79 = scmp.eq.s32.totalorder %s19, 0
      %p80 = por %p78, %p79
      %p81 = scmp.ne.s32.totalorder %s67, %s68
      %p82 = scmp.eq.s32.totalorder %s20, 1
      %p83 = por %p81, %p82
      %p85 = scmp.ne.s32.totalorder %s68, %s84
      %p86 = scmp.eq.s32.totalorder %s20, 0
      %p87 = por %p85, %p86
      %s88 = ssub.s32 %s21, %s33
      %s89 = ssub.s32 %s22, %s29
      %s90 = sor.u32 %s88, %s89
      %p91 = scmp.eq.s32.totalorder %s90, 0
      %s93 = sadd.s32 %s92, 1
      %s94 = scalar_select %p91, %s92, %s93
      %p97 = pneg %p91
      %p98 = scmp.eq.s32.totalorder %s14, 1
      %p99 = por %p97, %p98
      %p100 = scmp.ne.s32.totalorder %s92, %s95
      %p101 = scmp.eq.s32.totalorder %s14, 0
      %p102 = por %p100, %p101
      %p103 = scmp.ne.s32.totalorder %s92, %s95
      %p104 = scmp.eq.s32.totalorder %s19, 1
      %p105 = por %p103, %p104
      %p106 = scmp.ne.s32.totalorder %s95, %s96
      %p107 = scmp.eq.s32.totalorder %s19, 0
      %p108 = por %p106, %p107
      %p109 = scmp.ne.s32.totalorder %s95, %s96
      %p110 = scmp.eq.s32.totalorder %s20, 1
      %p111 = por %p109, %p110
      %p113 = scmp.ne.s32.totalorder %s96, %s112
      %p114 = scmp.eq.s32.totalorder %s20, 0
      %p115 = por %p113, %p114
      %p116 = scmp.le.s32.totalorder 1, %s14
      %p117 = scmp.lt.s32.totalorder %s14, 3
      %p118 = pnand %p116, %p117
      %p119 = pneg %p118
      // Predicated region
      $region9: #{tpu_custom_call.1} parent=5 // pred_check
        _
      $region10: #{tpu_custom_call.1} parent=5 // pred_check_branch
        %121 = sbr.rel (%p118) target = $region12
      $region11: #{tpu_custom_call.1} parent=5 // pred_region
        %s122 = ssub.s32 %s14, 1
      $region12: #{tpu_custom_call.1} parent=5 // pred_fallthru
        _
      %p123 = scmp.lt.s32.totalorder %s14, 2
      // Predicated region
      $region13: #{tpu_custom_call.1} parent=5 // pred_check
        %p124 = pneg %p123
      $region14: #{tpu_custom_call.1} parent=5 // pred_check_branch
        %126 = sbr.rel (%p124) target = $region16
      $region15: #{tpu_custom_call.1} parent=5 // pred_region
        // Predicated region
        $region17: #{tpu_custom_call.1} parent=15 // pred_check
          %p127 = pneg %p46
        $region18: #{tpu_custom_call.1} parent=15 // pred_check_branch
          %129 = sbr.rel (%p127) target = $region20
        $region19: #{tpu_custom_call.1} parent=15 // pred_region
          %p130 = scmp.lt.s32.totalorder %s21, 1
          %s131 = scalar_select %p130, %s21, 1
          %s132 = smul.addr %s131, 4
          %s133 = scalar_lea.vmem %s0, %s132
        $region20: #{tpu_custom_call.1} parent=15 // pred_fallthru
          _
        // Predicated region
        $region21: #{tpu_custom_call.1} parent=15 // pred_check
          %p134 = pneg %p74
        $region22: #{tpu_custom_call.1} parent=15 // pred_check_branch
          %136 = sbr.rel (%p134) target = $region24
        $region23: #{tpu_custom_call.1} parent=15 // pred_region
          %s137 = sand.u32 %s64, 1
          %s138 = scalar_lea.sflag [#allocation3], %s137
          %s139 = sand.u32 %s64, 1
          %s140 = smul.addr %s139, 16
          %s141 = scalar_lea.vmem [#allocation2], %s140
          %s142 = smul.u32 2, %s22
          %144 = vsyncadd %s138, 0
          %s145 = smul.addr %s21, 2
          %s146 = sadd.s32 %s142, %s145
          %s147 = smul.addr %s146, 8
          %s148 = scalar_lea.hbm %s1, %s147
          %s150 = sshll.u32 %s148, 4
          %s151 = int_to_ptr.hbm [resolvable:$true] %s150
          %s152 = sshll.u32 %s141, 4
          %s153 = int_to_ptr.vmem [resolvable:$true] %s152
          %155 = dma.hbm_to_vmem [thread:$0]  %s151, 256, %s153, %s138
        $region24: #{tpu_custom_call.1} parent=15 // pred_fallthru
          _
      $region16: #{tpu_custom_call.1} parent=5 // pred_fallthru
        _
      %p156 = scmp.le.s32.totalorder 1, %s14
      %p157 = scmp.lt.s32.totalorder %s14, 3
      %p158 = pnand %p156, %p157
      %p159 = pneg %p158
      // Predicated region
      $region25: #{tpu_custom_call.1} parent=5 // pred_check
        _
      $region26: #{tpu_custom_call.1} parent=5 // pred_check_branch
        %161 = sbr.rel (%p158) target = $region28
      $region27: #{tpu_custom_call.1} parent=5 // pred_region
        %s162 = ssub.s32 %s14, 1
        %s163 = sand.u32 %s67, 1
        %s164 = scalar_lea.sflag [#allocation3], %s163
        %s165 = sand.u32 %s67, 1
        %s166 = smul.addr %s165, 16
        %s167 = scalar_lea.vmem [#allocation2], %s166
        // Predicated region
        $region29: #{tpu_custom_call.1} parent=27 // pred_check
          %p168 = pneg %p80
        $region30: #{tpu_custom_call.1} parent=27 // pred_check_branch
          %170 = sbr.rel (%p168) target = $region32
        $region31: #{tpu_custom_call.1} parent=27 // pred_region
          %172 = dma.done %s164, 256
        $region32: #{tpu_custom_call.1} parent=27 // pred_fallthru
          _
        %p173 = scmp.lt.s32.totalorder %s23, 1
        %s174 = scalar_select %p173, %s23, 1
        %s175 = smul.addr %s174, 4
        %s176 = scalar_lea.vmem %s0, %s175
        %p177 = pneg %p52
        %p178 = pneg %p49
        %s179 = sand.u32 %s67, 1
        %s180 = scalar_lea.sflag [#allocation3], %s179
        %s181 = sand.u32 %s67, 1
        %s182 = smul.addr %s181, 16
        %s183 = scalar_lea.vmem [#allocation2], %s182
        %p184 = pneg %p80
        %p185 = pneg %p77
        %p186 = pneg %p108
        %p187 = pneg %p105
        %s188 = sand.u32 %s95, 1
        %s189 = scalar_lea.sflag [#allocation4], %s188
        %s190 = sand.u32 %s95, 1
        %s191 = smul.addr %s190, 8
        %s192 = scalar_lea.vmem [#allocation5], %s191
        %p193 = scmp.lt.s32.totalorder %s23, 1
        %s194 = scalar_select %p193, %s23, 1
        %s195 = smul.addr %s194, 4
        %s196 = scalar_lea.vmem %s0, %s195
        %s197 = smul.u32 2, %s24
        %s198 = smul.u32 2, %s24
        %v199 = vld [vmem:[%s167] sm:$0xff]
        %v200 = vld [vmem:[%s167 + $0x8] sm:$0xff]
        %v201 = vlaneseq
        %v202 = vshrl.u32 %v201, 7
        %v203 = vrot.slane %v199, 4
        %v204 = vmax.f32 %v199, %v203
        %v205 = vrot.slane %v204, 2
        %v206 = vmax.f32 %v204, %v205
        %v207 = vrot.slane %v206, 1
        %v208 = vmax.f32 %v206, %v207
        %v209 = vrot.slane %v200, 4
        %v210 = vmax.f32 %v200, %v209
        %v211 = vrot.slane %v210, 2
        %v212 = vmax.f32 %v210, %v211
        %v213 = vrot.slane %v212, 1
        %v214 = vmax.f32 %v212, %v213
        %vm215 = vcmp.eq.f32.partialorder %v199, %v208
        %vm216 = vcmp.eq.f32.partialorder %v200, %v214
        %v217 = vsel %vm215, %v202, 8
        %v218 = vsel %vm216, %v202, 8
        %v219 = vrot.slane %v217, 4
        %vm220 = vcmp.lt.s32.totalorder %v217, %v219
        %v221 = vsel %vm220, %v217, %v219
        %v222 = vrot.slane %v221, 2
        %vm223 = vcmp.lt.s32.totalorder %v221, %v222
        %v224 = vsel %vm223, %v221, %v222
        %v225 = vrot.slane %v224, 1
        %vm226 = vcmp.lt.s32.totalorder %v224, %v225
        %v227 = vsel %vm226, %v224, %v225
        %v228 = vrot.slane %v218, 4
        %vm229 = vcmp.lt.s32.totalorder %v218, %v228
        %v230 = vsel %vm229, %v218, %v228
        %v231 = vrot.slane %v230, 2
        %vm232 = vcmp.lt.s32.totalorder %v230, %v231
        %v233 = vsel %vm232, %v230, %v231
        %v234 = vrot.slane %v233, 1
        %vm235 = vcmp.lt.s32.totalorder %v233, %v234
        %v236 = vsel %vm235, %v233, %v234
        %vm237 = vcmp.eq.s32.totalorder %v202, %v227
        %vm238 = vcmp.eq.s32.totalorder %v202, %v236
        %v239 = vsel %vm237, -inf, %v199
        %v240 = vsel %vm238, -inf, %v200
        %v241 = vrot.slane %v239, 4
        %v242 = vmax.f32 %v239, %v241
        %v243 = vrot.slane %v242, 2
        %v244 = vmax.f32 %v242, %v243
        %v245 = vrot.slane %v244, 1
        %v246 = vmax.f32 %v244, %v245
        %v247 = vrot.slane %v240, 4
        %v248 = vmax.f32 %v240, %v247
        %v249 = vrot.slane %v248, 2
        %v250 = vmax.f32 %v248, %v249
        %v251 = vrot.slane %v250, 1
        %v252 = vmax.f32 %v250, %v251
        %vm253 = vcmp.eq.f32.partialorder %v239, %v246
        %vm254 = vcmp.eq.f32.partialorder %v240, %v252
        %v255 = vsel %vm253, %v202, 8
        %v256 = vsel %vm254, %v202, 8
        %v257 = vrot.slane %v255, 4
        %vm258 = vcmp.lt.s32.totalorder %v255, %v257
        %v259 = vsel %vm258, %v255, %v257
        %v260 = vrot.slane %v259, 2
        %vm261 = vcmp.lt.s32.totalorder %v259, %v260
        %v262 = vsel %vm261, %v259, %v260
        %v263 = vrot.slane %v262, 1
        %vm264 = vcmp.lt.s32.totalorder %v262, %v263
        %v265 = vsel %vm264, %v262, %v263
        %v266 = vrot.slane %v256, 4
        %vm267 = vcmp.lt.s32.totalorder %v256, %v266
        %v268 = vsel %vm267, %v256, %v266
        %v269 = vrot.slane %v268, 2
        %vm270 = vcmp.lt.s32.totalorder %v268, %v269
        %v271 = vsel %vm270, %v268, %v269
        %v272 = vrot.slane %v271, 1
        %vm273 = vcmp.lt.s32.totalorder %v271, %v272
        %v274 = vsel %vm273, %v271, %v272
        %vm275 = vcmp.eq.s32.totalorder %v202, %v265
        %vm276 = vcmp.eq.s32.totalorder %v202, %v274
        %v277 = vsel %vm275, -inf, %v239
        %v278 = vsel %vm276, -inf, %v240
        %v279 = vrot.slane %v277, 4
        %v280 = vmax.f32 %v277, %v279
        %v281 = vrot.slane %v280, 2
        %v282 = vmax.f32 %v280, %v281
        %v283 = vrot.slane %v282, 1
        %v284 = vmax.f32 %v282, %v283
        %v285 = vrot.slane %v278, 4
        %v286 = vmax.f32 %v278, %v285
        %v287 = vrot.slane %v286, 2
        %v288 = vmax.f32 %v286, %v287
        %v289 = vrot.slane %v288, 1
        %v290 = vmax.f32 %v288, %v289
        %v291 = vsub.f32 %v246, %v208
        %v292 = vsub.f32 %v252, %v214
        %v293 = vmul.f32 %v291, 1.442695
        %v294 = vpow.pop %v293
        %v295 = vmul.f32 %v292, 1.442695
        %v296 = vpow.pop %v295
        %v297 = vsub.f32 %v284, %v208
        %v298 = vsub.f32 %v290, %v214
        %v299 = vmul.f32 %v297, 1.442695
        %v300 = vpow.pop %v299
        %v301 = vmul.f32 %v298, 1.442695
        %v302 = vpow.pop %v301
        %v303 = vadd.f32 %v294, 1.0
        %v304 = vadd.f32 %v296, 1.0
        %v305 = vadd.f32 %v303, %v300
        %v306 = vadd.f32 %v304, %v302
        %v307 = vrcp.pop %v305
        %v308 = vrcp.pop %v306
        %v309 = vmul.f32 %v305, %v307
        %v310 = vmul.f32 %v306, %v308
        %v311 = vsub.f32 2.0, %v309
        %v312 = vsub.f32 2.0, %v310
        %v313 = vmul.f32 %v307, %v311
        %v314 = vmul.f32 %v308, %v312
        %v315 = vld [vmem:[%s196] sm:$0xf]
        %317 = vset.pattern.permute.xlu0 0
        %318 = vperm.xlu0 %317, %v315
        %v319 = vpop.permute.xlu0 %318
        %v321 = vmul.f32 %v319, %v313
        %v322 = vmul.f32 %v319, %v314
        %v323 = vmul.f32 %v294, %v313
        %v324 = vmul.f32 %v296, %v314
        %325 = vset.pattern.permute.xlu0 1
        %326 = vperm.xlu0 %325, %v315
        %v327 = vpop.permute.xlu0 %326
        %v329 = vmul.f32 %v327, %v323
        %v330 = vmul.f32 %v327, %v324
        %v331 = vadd.f32 %v321, %v329
        %v332 = vadd.f32 %v322, %v330
        %v333 = vmul.f32 %v300, %v313
        %v334 = vmul.f32 %v302, %v314
        %335 = vset.pattern.permute.xlu0 2
        %336 = vperm.xlu0 %335, %v315
        %v337 = vpop.permute.xlu0 %336
        %v339 = vmul.f32 %v337, %v333
        %v340 = vmul.f32 %v337, %v334
        %v341 = vadd.f32 %v331, %v339
        %v342 = vadd.f32 %v332, %v340
        %v345 = vrot.slane %v342, 4
        %vm346 = vcmask 1043456
        %v347 = vsel %vm346, %v341, %v345
        %349 = vst [vmem:[%s192] sm:$0xff] %v347
        %s350 = sand.u32 %s95, 1
        %s351 = scalar_lea.sflag [#allocation4], %s350
        %s352 = sand.u32 %s95, 1
        %s353 = smul.addr %s352, 8
        %s354 = scalar_lea.vmem [#allocation5], %s353
        // Predicated region
        $region33: #{tpu_custom_call.1} parent=27 // pred_check
          %p355 = pneg %p105
        $region34: #{tpu_custom_call.1} parent=27 // pred_check_branch
          %357 = sbr.rel (%p355) target = $region36
        $region35: #{tpu_custom_call.1} parent=27 // pred_region
          %s358 = smul.u32 2, %s24
          %360 = vsyncadd %s351, 0
          %s361 = smul.addr %s23, 2
          %s362 = sadd.s32 %s358, %s361
          %s363 = smul.addr %s362, 4
          %s364 = scalar_lea.hbm %s2, %s363
          %s366 = sshll.u32 %s354, 4
          %s367 = int_to_ptr.vmem [resolvable:$true] %s366
          %s368 = sshll.u32 %s364, 4
          %s369 = int_to_ptr.hbm [resolvable:$true] %s368
          %371 = dma.vmem_to_hbm [thread:$0]  %s367, 128, %s369, %s351
        $region36: #{tpu_custom_call.1} parent=27 // pred_fallthru
          _
      $region28: #{tpu_custom_call.1} parent=5 // pred_fallthru
        _
      %p372 = scmp.le.s32.totalorder 2, %s14
      // Predicated region
      $region37: #{tpu_custom_call.1} parent=5 // pred_check
        %p373 = pneg %p372
      $region38: #{tpu_custom_call.1} parent=5 // pred_check_branch
        %375 = sbr.rel (%p373) target = $region40
      $region39: #{tpu_custom_call.1} parent=5 // pred_region
        %s376 = ssub.s32 %s14, 2
        // Predicated region
        $region41: #{tpu_custom_call.1} parent=39 // pred_check
          %p377 = pneg %p111
        $region42: #{tpu_custom_call.1} parent=39 // pred_check_branch
          %379 = sbr.rel (%p377) target = $region44
        $region43: #{tpu_custom_call.1} parent=39 // pred_region
          %s380 = sand.u32 %s96, 1
          %s381 = scalar_lea.sflag [#allocation4], %s380
          %s382 = sand.u32 %s96, 1
          %s383 = smul.addr %s382, 8
          %s384 = scalar_lea.vmem [#allocation5], %s383
          %386 = dma.done %s381, 128
        $region44: #{tpu_custom_call.1} parent=39 // pred_fallthru
          _
      $region40: #{tpu_custom_call.1} parent=5 // pred_fallthru
        _
    $region6: #{tpu_custom_call.1} parent=1 // loop_footer
      %s18 = sadd.s32 1, %s14
    $region7: #{tpu_custom_call.1} parent=1 // loop_footer_branch
      %13 = sbr.rel target = $region3
    $region8: #{tpu_custom_call.1} parent=1 // loop_exit
      _
    %387 = vsyncpa [#allocation3], 1
    %s388 = scalar_lea.sflag [#allocation3], 1
    %389 = vsyncpa %s388, 1
    %390 = vsyncpa [#allocation4], 1
    %s391 = scalar_lea.sflag [#allocation4], 1
    %392 = vsyncpa %s391, 1

</llo_original>
